<compile_context>
chip_gen: v5e
topology: v5e:2x2
jax: 0.10.0
libtpu: 0.0.40
codegen_flags: <defaults>
</compile_context>

<pallas_src>
import jax
import jax.numpy as jnp
from jax.experimental import pallas as pl
from jax.experimental.pallas import tpu as pltpu


def _identity_copy_kernel(x_ref, o_ref):
    # Elementwise copy of the current tile (identity forward pass).
    o_ref[...] = x_ref[...]


def _sublane_multiple(dtype):
    """Minimum sublane tiling for the dtype (8 for 4-byte, 16 bf16, 32 int8)."""
    itemsize = jnp.dtype(dtype).itemsize
    if itemsize >= 4:
        return 8
    return 8 * (4 // itemsize)


_LANE_CANDIDATES = (4096, 2048, 1024, 512, 384, 256, 128)


def _choose_2d_layout(total, dtype):
    """Pick a lane-dense (rows, lane) factorization of `total` elements.

    Prefers a lane width (multiple of 128) that leaves `rows` divisible by two
    full sublane tiles, so the grid has >= 2 steps (keeps both v7x TCs busy).
    Returns (rows, lane, sublane_multiple) or None if total % 128 != 0.
    """
    sub = _sublane_multiple(dtype)
    if total % 128 != 0:
        return None
    for c in _LANE_CANDIDATES:
        if total % c == 0 and (total // c) % (2 * sub) == 0:
            return total // c, c, sub
    for c in _LANE_CANDIDATES:
        if total % c == 0:
            return total // c, c, sub
    return None  # unreachable: 128 always divides total here


def face_module_forward(video_input, output_size=224, max_persons=2):
    """Pallas implementation of FaceModule.forward (identity)."""
    del output_size, max_persons  # unused by the forward pass, kept for parity
    orig_shape = video_input.shape
    dtype = video_input.dtype
    itemsize = jnp.dtype(dtype).itemsize

    total = 1
    for d in orig_shape:
        total *= d

    layout = _choose_2d_layout(total, dtype)
    if layout is None:
        # TODO(synk): element counts not divisible by 128 fall back to a
        # (rows, W) slab with masked lane stores; pad upstream if this matters.
        last = orig_shape[-1]
        rows, lane, sub = total // last, last, _sublane_multiple(dtype)
    else:
        rows, lane, sub = layout

    x2d = video_input.reshape(rows, lane)  # contiguous reshape: layout-only

    # Block sizing: target ~4 MiB per block. With aliased in/out streams each
    # double-buffered that is ~16 MiB live VMEM, under the 32 MiB scoped limit
    # set below on every generation (v5e/v6e/v7x). Cap so the grid keeps >= 2
    # steps when the array is large enough, for v7x dual-TensorCore sharding.
    target_block_bytes = 4 * 1024 * 1024
    tile_rows = max(sub, (target_block_bytes // (lane * itemsize)) // sub * sub)
    if rows >= 2 * sub:
        tile_rows = min(tile_rows, max(sub, (rows // 2) // sub * sub))
    tile_rows = min(tile_rows, ((rows + sub - 1) // sub) * sub)

    grid = (pl.cdiv(rows, tile_rows),)

    out2d = pl.pallas_call(
        _identity_copy_kernel,
        out_shape=jax.ShapeDtypeStruct((rows, lane), dtype),
        grid=grid,
        in_specs=[pl.BlockSpec((tile_rows, lane), lambda i: (i, 0))],
        out_specs=pl.BlockSpec((tile_rows, lane), lambda i: (i, 0)),
        # Identity op: let the output alias the input HBM buffer.
        input_output_aliases={0: 0},
        cost_estimate=pl.CostEstimate(
            flops=0,
            transcendentals=0,
            bytes_accessed=2 * total * itemsize,
        ),
        compiler_params=pltpu.CompilerParams(
            dimension_semantics=("parallel",),
            vmem_limit_bytes=32 * 1024 * 1024,
        ),
    )(x2d)

    return out2d.reshape(orig_shape)


if __name__ == "__main__":
    # FaceModule(output_size=224, max_persons=2) has no parameters; forward is
    # identity on the video input. Small synthetic input:
    # (batch=2, max_persons=2, channels=3, H=16, W=16).
    key = jax.random.PRNGKey(0)
    video_input = jax.random.normal(key, (2, 2, 3, 16, 16), dtype=jnp.float32)

    out = face_module_forward(video_input, output_size=224, max_persons=2)
    out = jax.block_until_ready(out)

    assert out.shape == video_input.shape
    assert out.dtype == video_input.dtype
    assert bool(jnp.array_equal(out, video_input))
    print("KERNEL_OK")
</pallas_src>

<mosaic_0001>
module attributes {stable_mosaic.version = 11 : i64} {
  func.func @_identity_copy_kernel(%arg0: i32, %arg1: memref<8x1024xf32, #tpu.memory_space<vmem>>, %arg2: memref<8x1024xf32, #tpu.memory_space<vmem>>) attributes {dimension_semantics = [#tpu.dimension_semantics<parallel>], iteration_bounds = array<i64: 1>, scalar_prefetch = 0 : i64, scratch_operands = 0 : i64, tpu.core_type = #tpu.core_type<tc>, window_params = [{transform_indices = @transform_0, window_bounds = array<i64: 8, 1024>}, {transform_indices = @transform_1, window_bounds = array<i64: 8, 1024>}]} {
    %c0 = arith.constant 0 : index
    %c0_0 = arith.constant 0 : index
    %0 = vector.load %arg1[%c0, %c0_0] : memref<8x1024xf32, #tpu.memory_space<vmem>>, vector<8x1024xf32>
    %c0_1 = arith.constant 0 : index
    %c0_2 = arith.constant 0 : index
    %1 = vector.load %arg2[%c0_1, %c0_2] : memref<8x1024xf32, #tpu.memory_space<vmem>>, vector<8x1024xf32>
    tpu.vector_store %arg2[%c0_1, %c0_2], %0 {strides = array<i32>} : memref<8x1024xf32, #tpu.memory_space<vmem>>, vector<8x1024xf32>,
    return
  }
  func.func @transform_0(%arg0: i32) -> (i32, i32) {
    %c0_i32 = arith.constant 0 : i32
    %c0_i32_0 = arith.constant 0 : i32
    return %arg0, %c0_i32 : i32, i32
  }
  func.func @transform_1(%arg0: i32) -> (i32, i32) {
    %c0_i32 = arith.constant 0 : i32
    %c0_i32_0 = arith.constant 0 : i32
    return %arg0, %c0_i32 : i32, i32
  }
}

</mosaic_0001>

<llo_original>
// kernel: tpu_custom_call.1
$region0: #{tpu_custom_call.1}
  #allocation0 [shape = 'u32[]', space=smem, size = 0x4, offset = 0x4, fixed_abs, tag = 'smem constant byte address 0x4 - core index']
  #allocation1 [shape = 'u32[72,128]{1,0:T(1,128)}', space=vmem, size = 0x9000, scoped, tag = 'internal scratch']
  %s0 = inlined_call_operand.hbm [shape: f32[3,1024], index: 0, kind: input, shape index: {}, may-alias: {0,1}]
  %s1 = inlined_call_operand.hbm [shape: f32[3,1024], index: 1, kind: output, shape index: {}, may-alias: {0,1}]
  %s2 = sld [smem:[#allocation0]]
  $region18: #{tpu_custom_call.1} parent=0
    _
  %s4 = ssub.s32 1, %s2
  %s5 = scalar_select 0, %s4, %s2
  $region1: #{tpu_custom_call.1} parent=0
    #allocation2 [shape = 'u8[32768]{0}', space=vmem, size = 0x8000, scoped, tag = 'input window, operand 0, single buffered']
    #allocation3 [shape = 's32[1]{0}', space=sflag, size = 0x4, scoped, tag = 'scoped memory for tpu_custom_call.1']
    #allocation4 [shape = 's32[1]{0}', space=sflag, size = 0x4, scoped, tag = 'scoped memory for tpu_custom_call.1']
    #allocation5 [shape = 'u8[32768]{0}', space=vmem, size = 0x8000, scoped, tag = 'output window, operand 0, single buffered']
    %6 = vsyncpa [#allocation3], 0
    %7 = vsyncpa [#allocation4], 0
    // Predicated region
    $region2: #{tpu_custom_call.1} parent=1 // pred_check
      _
    $region3: #{tpu_custom_call.1} parent=1 // pred_check_branch
      %9 = sbr.rel (0) target = $region5
    $region4: #{tpu_custom_call.1} parent=1 // pred_region
      %11 = vsyncadd [#allocation3], 512
      %s12 = sshll.u32 %s0, 4
      %s13 = int_to_ptr.hbm [resolvable:$true] %s12
      %s14 = sshll.u32 [#allocation2], 4
      %s15 = int_to_ptr.vmem [resolvable:$true] %s14
      %20 = dma.hbm_to_vmem [thread:$0]  %s13, 512, %s15, [#allocation3], 512, 512, 32
    $region5: #{tpu_custom_call.1} parent=1 // pred_fallthru
      _
    // Predicated region
    $region6: #{tpu_custom_call.1} parent=1 // pred_check
      _
    $region7: #{tpu_custom_call.1} parent=1 // pred_check_branch
      %22 = sbr.rel (0) target = $region9
    $region8: #{tpu_custom_call.1} parent=1 // pred_region
      %24 = dma.done [#allocation3], 1024
    $region9: #{tpu_custom_call.1} parent=1 // pred_fallthru
      _
    %v25 = vld [vmem:[#allocation2] sm:$0xff]
    %v26 = vld [vmem:[#allocation2 + $0x8] sm:$0xff]
    %v27 = vld [vmem:[#allocation2 + $0x10] sm:$0xff]
    %v28 = vld [vmem:[#allocation2 + $0x18] sm:$0xff]
    %v29 = vld [vmem:[#allocation2 + $0x20] sm:$0xff]
    %v30 = vld [vmem:[#allocation2 + $0x28] sm:$0xff]
    %v31 = vld [vmem:[#allocation2 + $0x30] sm:$0xff]
    %v32 = vld [vmem:[#allocation2 + $0x38] sm:$0xff]
    %33 = vst [vmem:[#allocation5] sm:$0xff] %v25
    %34 = vst [vmem:[#allocation5 + $0x8] sm:$0xff] %v26
    %35 = vst [vmem:[#allocation5 + $0x10] sm:$0xff] %v27
    %36 = vst [vmem:[#allocation5 + $0x18] sm:$0xff] %v28
    %37 = vst [vmem:[#allocation5 + $0x20] sm:$0xff] %v29
    %38 = vst [vmem:[#allocation5 + $0x28] sm:$0xff] %v30
    %39 = vst [vmem:[#allocation5 + $0x30] sm:$0xff] %v31
    %40 = vst [vmem:[#allocation5 + $0x38] sm:$0xff] %v32
    // Predicated region
    $region10: #{tpu_custom_call.1} parent=1 // pred_check
      _
    $region11: #{tpu_custom_call.1} parent=1 // pred_check_branch
      %42 = sbr.rel (0) target = $region13
    $region12: #{tpu_custom_call.1} parent=1 // pred_region
      %44 = vsyncadd [#allocation4], 512
      %s45 = sshll.u32 [#allocation5], 4
      %s46 = int_to_ptr.vmem [resolvable:$true] %s45
      %s47 = sshll.u32 %s1, 4
      %s48 = int_to_ptr.hbm [resolvable:$true] %s47
      %53 = dma.vmem_to_hbm [thread:$0]  %s46, 512, %s48, [#allocation4], 512, 512, 32
    $region13: #{tpu_custom_call.1} parent=1 // pred_fallthru
      _
    // Predicated region
    $region14: #{tpu_custom_call.1} parent=1 // pred_check
      _
    $region15: #{tpu_custom_call.1} parent=1 // pred_check_branch
      %55 = sbr.rel (0) target = $region17
    $region16: #{tpu_custom_call.1} parent=1 // pred_region
      %57 = dma.done [#allocation4], 1024
    $region17: #{tpu_custom_call.1} parent=1 // pred_fallthru
      _
    %58 = vsyncpa [#allocation3], 1
    %59 = vsyncpa [#allocation4], 1

</llo_original>
